<compile_context>
chip_gen: v5e
topology: v5e:2x2
jax: 0.10.0
libtpu: 0.0.40
codegen_flags: <defaults>
</compile_context>

<pallas_src>
import functools

import jax
import jax.numpy as jnp
from jax.experimental import pallas as pl
from jax.experimental.pallas import tpu as pltpu


def _locally_connected_kernel(x_ref, w_ref, b_ref, o_ref, *, use_vpu_fma):
    # x_ref: (tn, g, m1)  w_ref: (m1, g, m2)  b_ref: (g, m2)  o_ref: (tn, g, m2)
    x = x_ref[...].astype(jnp.float32)
    w = w_ref[...].astype(jnp.float32)
    b = b_ref[...].astype(jnp.float32)
    tn, g, m1 = x_ref.shape
    m2 = w_ref.shape[-1]

    if use_vpu_fma:
        # m1 broadcast-FMAs over the (tn, g, m2) tile; m1 is small and static,
        # so the loop fully unrolls at trace time.  w[k:k+1] is already in the
        # accumulator's (sublane=g, lane=m2) layout thanks to the wrapper-side
        # weight transpose, so no per-k relayout is needed.
        acc = jnp.zeros((tn, g, m2), jnp.float32)
        for k in range(m1):
            acc = acc + x[:, :, k:k + 1] * w[k:k + 1]     # (tn,g,1)*(1,g,m2)
    else:
        # Large contraction: batched matmul on the MXU, f32 accumulation.
        acc = jnp.einsum("ngk,kgo->ngo", x, w,
                         preferred_element_type=jnp.float32)

    acc = acc + b[None, :, :]                             # (1, g, m2) over tn
    o_ref[...] = acc.astype(o_ref.dtype)


def _choose_tiles(n, d, m1, m2, bx, bw, bb, bo,
                  *, d_tile=None, n_tile=None, budget_bytes=8 << 20):
    """Pick (g, tn): d-group size and batch-tile size.

    Layout legality: g is the second-minor dim of the x/out blocks, so it must
    equal d or be a multiple of 8.  tn is a leading block dim (unconstrained).
    """
    wd = m1 * m2 * bw + m2 * bb          # weight + bias bytes per d index
    cd = m1 * bx + m2 * bo               # x + out bytes per (n, d) cell

    # ---- d group ----
    if d_tile is not None:
        g = int(d_tile)
    elif d * (wd + 8 * cd) <= budget_bytes:
        g = d                            # whole d per step (typical ComGRN case)
    else:
        g = int(budget_bytes // (wd + 8 * cd))
    if g >= d or d <= 8:
        g = d
    else:
        g = max(8, (g // 8) * 8)         # multiple of 8; grid uses cdiv + masking

    # ---- batch tile ----
    step_fixed = g * wd                  # resident weight + bias slab
    per_row = g * cd                     # x + out bytes per batch row
    if n_tile is not None:
        tn = int(n_tile)
    else:
        avail = max(budget_bytes - step_fixed, per_row)
        tn = int(avail // per_row)
    tn = max(1, min(tn, n))
    if tn < n and tn >= 8:
        tn = (tn // 8) * 8               # tidy DMA chunks (not required)
    return g, tn


def locally_connected(x, weight, bias=None, *, weight_dtype=None,
                      d_tile=None, n_tile=None):
    """x: [n, d, m1], weight: [d, m1, m2], bias: [d, m2] or None -> [n, d, m2]."""
    n, d, m1 = x.shape
    d_w, m1_w, m2 = weight.shape
    assert d == d_w and m1 == m1_w
    if bias is None:
        bias = jnp.zeros((d, m2), x.dtype)
    assert bias.shape == (d, m2)

    if weight_dtype is not None:
        # Stream weights narrower (e.g. bf16); accumulation stays f32 in-kernel.
        weight = weight.astype(weight_dtype)

    out_dtype = x.dtype

    # One-time transpose of the small weight to (m1, d, m2) so in-kernel
    # w[k] is a (g, m2) tile in the accumulator's layout.  Costs 2*d*m1*m2
    # bytes of HBM traffic — negligible next to streaming x (n*d*m1).
    weight_t = jnp.transpose(weight, (1, 0, 2))

    bx = jnp.dtype(x.dtype).itemsize
    bw = jnp.dtype(weight.dtype).itemsize
    bb = jnp.dtype(bias.dtype).itemsize
    bo = jnp.dtype(out_dtype).itemsize

    g, tn = _choose_tiles(n, d, m1, m2, bx, bw, bb, bo,
                          d_tile=d_tile, n_tile=n_tile)

    # d-major grid: the inner axis is the batch, so the weight / bias block
    # index is unchanged across it and Pallas keeps it resident (no re-DMA).
    grid = (pl.cdiv(d, g), pl.cdiv(n, tn))

    step_bytes = g * (m1 * m2 * bw + m2 * bb) + tn * g * (m1 * bx + m2 * bo)
    vmem_limit_bytes = int(min(48 << 20, max(32 << 20, 4 * step_bytes)))

    use_vpu_fma = m1 <= 64

    out = pl.pallas_call(
        functools.partial(_locally_connected_kernel, use_vpu_fma=use_vpu_fma),
        out_shape=jax.ShapeDtypeStruct((n, d, m2), out_dtype),
        grid_spec=pltpu.PrefetchScalarGridSpec(
            num_scalar_prefetch=0,
            grid=grid,
            in_specs=[
                pl.BlockSpec((tn, g, m1), lambda j, i: (i, j, 0)),   # x (native)
                pl.BlockSpec((m1, g, m2), lambda j, i: (0, j, 0)),   # weight_t (revisited over i)
                pl.BlockSpec((g, m2),     lambda j, i: (j, 0)),      # bias (revisited over i)
            ],
            out_specs=pl.BlockSpec((tn, g, m2), lambda j, i: (i, j, 0)),
        ),
        compiler_params=pltpu.CompilerParams(
            dimension_semantics=("parallel", "parallel"),
            vmem_limit_bytes=vmem_limit_bytes,
        ),
    )(x, weight_t, bias)
    return out


if __name__ == "__main__":
    key = jax.random.PRNGKey(0)
    k_x, k_w, k_b, k_x2, k_w2, k_b2 = jax.random.split(key, 6)

    # --- Case 1: small shapes straight from the module docstring ---------
    n, d, m1, m2 = 8, 4, 16, 32
    # Deterministic init mirroring reset_parameters(): uniform(+-sqrt(1/m1)).
    bound = (1.0 / m1) ** 0.5
    weight = jax.random.uniform(k_w, (d, m1, m2), jnp.float32, -bound, bound)
    bias = jax.random.uniform(k_b, (d, m2), jnp.float32, -bound, bound)
    x = jax.random.normal(k_x, (n, d, m1), jnp.float32)

    out = jax.block_until_ready(locally_connected(x, weight, bias))
    ref = jnp.einsum("ndk,dko->ndo", x, weight) + bias[None, :, :]
    assert out.shape == (n, d, m2)
    assert jnp.allclose(out, ref, atol=1e-5, rtol=1e-5)

    # --- Case 2: multi-tile grid (forced tiles) + bf16 weight streaming --
    n2, d2, m12, m22 = 64, 40, 16, 8
    bound2 = (1.0 / m12) ** 0.5
    w2 = jax.random.uniform(k_w2, (d2, m12, m22), jnp.float32, -bound2, bound2)
    b2 = jax.random.uniform(k_b2, (d2, m22), jnp.float32, -bound2, bound2)
    x2 = jax.random.normal(k_x2, (n2, d2, m12), jnp.float32)
    ref2 = jnp.einsum("ndk,dko->ndo", x2, w2) + b2[None, :, :]

    out2 = jax.block_until_ready(
        locally_connected(x2, w2, b2, d_tile=8, n_tile=16))
    assert jnp.allclose(out2, ref2, atol=1e-5, rtol=1e-5)

    out2_bf16 = jax.block_until_ready(
        locally_connected(x2, w2, b2, weight_dtype=jnp.bfloat16))
    assert jnp.allclose(out2_bf16, ref2, atol=5e-2, rtol=5e-2)

    print("KERNEL_OK")
</pallas_src>

<mosaic_0001>
module attributes {stable_mosaic.version = 11 : i64} {
  func.func @_locally_connected_kernel(%arg0: i32, %arg1: i32, %arg2: memref<8x4x16xf32, #tpu.memory_space<vmem>>, %arg3: memref<16x4x32xf32, #tpu.memory_space<vmem>>, %arg4: memref<4x32xf32, #tpu.memory_space<vmem>>, %arg5: memref<8x4x32xf32, #tpu.memory_space<vmem>>) attributes {dimension_semantics = [#tpu.dimension_semantics<parallel>, #tpu.dimension_semantics<parallel>], iteration_bounds = array<i64: 1, 1>, scalar_prefetch = 0 : i64, scratch_operands = 0 : i64, tpu.core_type = #tpu.core_type<tc>, window_params = [{transform_indices = @transform_0, window_bounds = array<i64: 8, 4, 16>}, {transform_indices = @transform_1, window_bounds = array<i64: 16, 4, 32>}, {transform_indices = @transform_2, window_bounds = array<i64: 4, 32>}, {transform_indices = @transform_3, window_bounds = array<i64: 8, 4, 32>}]} {
    %c0 = arith.constant 0 : index
    %c0_0 = arith.constant 0 : index
    %c0_1 = arith.constant 0 : index
    %0 = vector.load %arg2[%c0, %c0_0, %c0_1] : memref<8x4x16xf32, #tpu.memory_space<vmem>>, vector<8x4x16xf32>
    %c0_2 = arith.constant 0 : index
    %c0_3 = arith.constant 0 : index
    %c0_4 = arith.constant 0 : index
    %1 = vector.load %arg3[%c0_2, %c0_3, %c0_4] : memref<16x4x32xf32, #tpu.memory_space<vmem>>, vector<16x4x32xf32>
    %c0_5 = arith.constant 0 : index
    %c0_6 = arith.constant 0 : index
    %2 = vector.load %arg4[%c0_5, %c0_6] : memref<4x32xf32, #tpu.memory_space<vmem>>, vector<4x32xf32>
    %cst = arith.constant 0.000000e+00 : f32
    %3 = vector.broadcast %cst : f32 to vector<8x4x32xf32>
    %4 = vector.extract_strided_slice %0 {offsets = [0, 0, 0], sizes = [8, 4, 1], strides = [1, 1, 1]} : vector<8x4x16xf32> to vector<8x4x1xf32>
    %5 = vector.extract_strided_slice %1 {offsets = [0, 0, 0], sizes = [1, 4, 32], strides = [1, 1, 1]} : vector<16x4x32xf32> to vector<1x4x32xf32>
    %6 = vector.broadcast %4 : vector<8x4x1xf32> to vector<8x4x32xf32>
    %7 = vector.broadcast %5 : vector<1x4x32xf32> to vector<8x4x32xf32>
    %8 = arith.mulf %6, %7 : vector<8x4x32xf32>
    %9 = arith.addf %3, %8 : vector<8x4x32xf32>
    %10 = vector.extract_strided_slice %0 {offsets = [0, 0, 1], sizes = [8, 4, 1], strides = [1, 1, 1]} : vector<8x4x16xf32> to vector<8x4x1xf32>
    %11 = vector.extract_strided_slice %1 {offsets = [1, 0, 0], sizes = [1, 4, 32], strides = [1, 1, 1]} : vector<16x4x32xf32> to vector<1x4x32xf32>
    %12 = vector.broadcast %10 : vector<8x4x1xf32> to vector<8x4x32xf32>
    %13 = vector.broadcast %11 : vector<1x4x32xf32> to vector<8x4x32xf32>
    %14 = arith.mulf %12, %13 : vector<8x4x32xf32>
    %15 = arith.addf %9, %14 : vector<8x4x32xf32>
    %16 = vector.extract_strided_slice %0 {offsets = [0, 0, 2], sizes = [8, 4, 1], strides = [1, 1, 1]} : vector<8x4x16xf32> to vector<8x4x1xf32>
    %17 = vector.extract_strided_slice %1 {offsets = [2, 0, 0], sizes = [1, 4, 32], strides = [1, 1, 1]} : vector<16x4x32xf32> to vector<1x4x32xf32>
    %18 = vector.broadcast %16 : vector<8x4x1xf32> to vector<8x4x32xf32>
    %19 = vector.broadcast %17 : vector<1x4x32xf32> to vector<8x4x32xf32>
    %20 = arith.mulf %18, %19 : vector<8x4x32xf32>
    %21 = arith.addf %15, %20 : vector<8x4x32xf32>
    %22 = vector.extract_strided_slice %0 {offsets = [0, 0, 3], sizes = [8, 4, 1], strides = [1, 1, 1]} : vector<8x4x16xf32> to vector<8x4x1xf32>
    %23 = vector.extract_strided_slice %1 {offsets = [3, 0, 0], sizes = [1, 4, 32], strides = [1, 1, 1]} : vector<16x4x32xf32> to vector<1x4x32xf32>
    %24 = vector.broadcast %22 : vector<8x4x1xf32> to vector<8x4x32xf32>
    %25 = vector.broadcast %23 : vector<1x4x32xf32> to vector<8x4x32xf32>
    %26 = arith.mulf %24, %25 : vector<8x4x32xf32>
    %27 = arith.addf %21, %26 : vector<8x4x32xf32>
    %28 = vector.extract_strided_slice %0 {offsets = [0, 0, 4], sizes = [8, 4, 1], strides = [1, 1, 1]} : vector<8x4x16xf32> to vector<8x4x1xf32>
    %29 = vector.extract_strided_slice %1 {offsets = [4, 0, 0], sizes = [1, 4, 32], strides = [1, 1, 1]} : vector<16x4x32xf32> to vector<1x4x32xf32>
    %30 = vector.broadcast %28 : vector<8x4x1xf32> to vector<8x4x32xf32>
    %31 = vector.broadcast %29 : vector<1x4x32xf32> to vector<8x4x32xf32>
    %32 = arith.mulf %30, %31 : vector<8x4x32xf32>
    %33 = arith.addf %27, %32 : vector<8x4x32xf32>
    %34 = vector.extract_strided_slice %0 {offsets = [0, 0, 5], sizes = [8, 4, 1], strides = [1, 1, 1]} : vector<8x4x16xf32> to vector<8x4x1xf32>
    %35 = vector.extract_strided_slice %1 {offsets = [5, 0, 0], sizes = [1, 4, 32], strides = [1, 1, 1]} : vector<16x4x32xf32> to vector<1x4x32xf32>
    %36 = vector.broadcast %34 : vector<8x4x1xf32> to vector<8x4x32xf32>
    %37 = vector.broadcast %35 : vector<1x4x32xf32> to vector<8x4x32xf32>
    %38 = arith.mulf %36, %37 : vector<8x4x32xf32>
    %39 = arith.addf %33, %38 : vector<8x4x32xf32>
    %40 = vector.extract_strided_slice %0 {offsets = [0, 0, 6], sizes = [8, 4, 1], strides = [1, 1, 1]} : vector<8x4x16xf32> to vector<8x4x1xf32>
    %41 = vector.extract_strided_slice %1 {offsets = [6, 0, 0], sizes = [1, 4, 32], strides = [1, 1, 1]} : vector<16x4x32xf32> to vector<1x4x32xf32>
    %42 = vector.broadcast %40 : vector<8x4x1xf32> to vector<8x4x32xf32>
    %43 = vector.broadcast %41 : vector<1x4x32xf32> to vector<8x4x32xf32>
    %44 = arith.mulf %42, %43 : vector<8x4x32xf32>
    %45 = arith.addf %39, %44 : vector<8x4x32xf32>
    %46 = vector.extract_strided_slice %0 {offsets = [0, 0, 7], sizes = [8, 4, 1], strides = [1, 1, 1]} : vector<8x4x16xf32> to vector<8x4x1xf32>
    %47 = vector.extract_strided_slice %1 {offsets = [7, 0, 0], sizes = [1, 4, 32], strides = [1, 1, 1]} : vector<16x4x32xf32> to vector<1x4x32xf32>
    %48 = vector.broadcast %46 : vector<8x4x1xf32> to vector<8x4x32xf32>
    %49 = vector.broadcast %47 : vector<1x4x32xf32> to vector<8x4x32xf32>
    %50 = arith.mulf %48, %49 : vector<8x4x32xf32>
    %51 = arith.addf %45, %50 : vector<8x4x32xf32>
    %52 = vector.extract_strided_slice %0 {offsets = [0, 0, 8], sizes = [8, 4, 1], strides = [1, 1, 1]} : vector<8x4x16xf32> to vector<8x4x1xf32>
    %53 = vector.extract_strided_slice %1 {offsets = [8, 0, 0], sizes = [1, 4, 32], strides = [1, 1, 1]} : vector<16x4x32xf32> to vector<1x4x32xf32>
    %54 = vector.broadcast %52 : vector<8x4x1xf32> to vector<8x4x32xf32>
    %55 = vector.broadcast %53 : vector<1x4x32xf32> to vector<8x4x32xf32>
    %56 = arith.mulf %54, %55 : vector<8x4x32xf32>
    %57 = arith.addf %51, %56 : vector<8x4x32xf32>
    %58 = vector.extract_strided_slice %0 {offsets = [0, 0, 9], sizes = [8, 4, 1], strides = [1, 1, 1]} : vector<8x4x16xf32> to vector<8x4x1xf32>
    %59 = vector.extract_strided_slice %1 {offsets = [9, 0, 0], sizes = [1, 4, 32], strides = [1, 1, 1]} : vector<16x4x32xf32> to vector<1x4x32xf32>
    %60 = vector.broadcast %58 : vector<8x4x1xf32> to vector<8x4x32xf32>
    %61 = vector.broadcast %59 : vector<1x4x32xf32> to vector<8x4x32xf32>
    %62 = arith.mulf %60, %61 : vector<8x4x32xf32>
    %63 = arith.addf %57, %62 : vector<8x4x32xf32>
    %64 = vector.extract_strided_slice %0 {offsets = [0, 0, 10], sizes = [8, 4, 1], strides = [1, 1, 1]} : vector<8x4x16xf32> to vector<8x4x1xf32>
    %65 = vector.extract_strided_slice %1 {offsets = [10, 0, 0], sizes = [1, 4, 32], strides = [1, 1, 1]} : vector<16x4x32xf32> to vector<1x4x32xf32>
    %66 = vector.broadcast %64 : vector<8x4x1xf32> to vector<8x4x32xf32>
    %67 = vector.broadcast %65 : vector<1x4x32xf32> to vector<8x4x32xf32>
    %68 = arith.mulf %66, %67 : vector<8x4x32xf32>
    %69 = arith.addf %63, %68 : vector<8x4x32xf32>
    %70 = vector.extract_strided_slice %0 {offsets = [0, 0, 11], sizes = [8, 4, 1], strides = [1, 1, 1]} : vector<8x4x16xf32> to vector<8x4x1xf32>
    %71 = vector.extract_strided_slice %1 {offsets = [11, 0, 0], sizes = [1, 4, 32], strides = [1, 1, 1]} : vector<16x4x32xf32> to vector<1x4x32xf32>
    %72 = vector.broadcast %70 : vector<8x4x1xf32> to vector<8x4x32xf32>
    %73 = vector.broadcast %71 : vector<1x4x32xf32> to vector<8x4x32xf32>
    %74 = arith.mulf %72, %73 : vector<8x4x32xf32>
    %75 = arith.addf %69, %74 : vector<8x4x32xf32>
    %76 = vector.extract_strided_slice %0 {offsets = [0, 0, 12], sizes = [8, 4, 1], strides = [1, 1, 1]} : vector<8x4x16xf32> to vector<8x4x1xf32>
    %77 = vector.extract_strided_slice %1 {offsets = [12, 0, 0], sizes = [1, 4, 32], strides = [1, 1, 1]} : vector<16x4x32xf32> to vector<1x4x32xf32>
    %78 = vector.broadcast %76 : vector<8x4x1xf32> to vector<8x4x32xf32>
    %79 = vector.broadcast %77 : vector<1x4x32xf32> to vector<8x4x32xf32>
    %80 = arith.mulf %78, %79 : vector<8x4x32xf32>
    %81 = arith.addf %75, %80 : vector<8x4x32xf32>
    %82 = vector.extract_strided_slice %0 {offsets = [0, 0, 13], sizes = [8, 4, 1], strides = [1, 1, 1]} : vector<8x4x16xf32> to vector<8x4x1xf32>
    %83 = vector.extract_strided_slice %1 {offsets = [13, 0, 0], sizes = [1, 4, 32], strides = [1, 1, 1]} : vector<16x4x32xf32> to vector<1x4x32xf32>
    %84 = vector.broadcast %82 : vector<8x4x1xf32> to vector<8x4x32xf32>
    %85 = vector.broadcast %83 : vector<1x4x32xf32> to vector<8x4x32xf32>
    %86 = arith.mulf %84, %85 : vector<8x4x32xf32>
    %87 = arith.addf %81, %86 : vector<8x4x32xf32>
    %88 = vector.extract_strided_slice %0 {offsets = [0, 0, 14], sizes = [8, 4, 1], strides = [1, 1, 1]} : vector<8x4x16xf32> to vector<8x4x1xf32>
    %89 = vector.extract_strided_slice %1 {offsets = [14, 0, 0], sizes = [1, 4, 32], strides = [1, 1, 1]} : vector<16x4x32xf32> to vector<1x4x32xf32>
    %90 = vector.broadcast %88 : vector<8x4x1xf32> to vector<8x4x32xf32>
    %91 = vector.broadcast %89 : vector<1x4x32xf32> to vector<8x4x32xf32>
    %92 = arith.mulf %90, %91 : vector<8x4x32xf32>
    %93 = arith.addf %87, %92 : vector<8x4x32xf32>
    %94 = vector.extract_strided_slice %0 {offsets = [0, 0, 15], sizes = [8, 4, 1], strides = [1, 1, 1]} : vector<8x4x16xf32> to vector<8x4x1xf32>
    %95 = vector.extract_strided_slice %1 {offsets = [15, 0, 0], sizes = [1, 4, 32], strides = [1, 1, 1]} : vector<16x4x32xf32> to vector<1x4x32xf32>
    %96 = vector.broadcast %94 : vector<8x4x1xf32> to vector<8x4x32xf32>
    %97 = vector.broadcast %95 : vector<1x4x32xf32> to vector<8x4x32xf32>
    %98 = arith.mulf %96, %97 : vector<8x4x32xf32>
    %99 = arith.addf %93, %98 : vector<8x4x32xf32>
    %100 = vector.shape_cast %2 : vector<4x32xf32> to vector<1x4x32xf32>
    %101 = vector.broadcast %100 : vector<1x4x32xf32> to vector<8x4x32xf32>
    %102 = arith.addf %99, %101 : vector<8x4x32xf32>
    %c0_7 = arith.constant 0 : index
    %c0_8 = arith.constant 0 : index
    %c0_9 = arith.constant 0 : index
    %103 = vector.load %arg5[%c0_7, %c0_8, %c0_9] : memref<8x4x32xf32, #tpu.memory_space<vmem>>, vector<8x4x32xf32>
    tpu.vector_store %arg5[%c0_7, %c0_8, %c0_9], %102 {strides = array<i32>} : memref<8x4x32xf32, #tpu.memory_space<vmem>>, vector<8x4x32xf32>,
    return
  }
  func.func @transform_0(%arg0: i32, %arg1: i32) -> (i32, i32, i32) {
    %c0_i32 = arith.constant 0 : i32
    %c0_i32_0 = arith.constant 0 : i32
    return %arg1, %arg0, %c0_i32 : i32, i32, i32
  }
  func.func @transform_1(%arg0: i32, %arg1: i32) -> (i32, i32, i32) {
    %c0_i32 = arith.constant 0 : i32
    %c0_i32_0 = arith.constant 0 : i32
    %c0_i32_1 = arith.constant 0 : i32
    return %c0_i32, %arg0, %c0_i32_0 : i32, i32, i32
  }
  func.func @transform_2(%arg0: i32, %arg1: i32) -> (i32, i32) {
    %c0_i32 = arith.constant 0 : i32
    %c0_i32_0 = arith.constant 0 : i32
    return %arg0, %c0_i32 : i32, i32
  }
  func.func @transform_3(%arg0: i32, %arg1: i32) -> (i32, i32, i32) {
    %c0_i32 = arith.constant 0 : i32
    %c0_i32_0 = arith.constant 0 : i32
    return %arg1, %arg0, %c0_i32 : i32, i32, i32
  }
}

</mosaic_0001>

<llo_original>
// kernel: tpu_custom_call.1
$region0: #{tpu_custom_call.1}
  #allocation0 [shape = 'u32[]', space=smem, size = 0x4, offset = 0x4, fixed_abs, tag = 'smem constant byte address 0x4 - core index']
  #allocation1 [shape = 'u32[72,128]{1,0:T(1,128)}', space=vmem, size = 0x9000, scoped, tag = 'internal scratch']
  %s0 = inlined_call_operand.hbm [shape: f32[8,4,16], index: 0, kind: input, shape index: {}]
  %s1 = inlined_call_operand.hbm [shape: f32[16,4,32], index: 1, kind: input, shape index: {}]
  %s2 = inlined_call_operand.hbm [shape: f32[4,32], index: 2, kind: input, shape index: {}]
  %s3 = inlined_call_operand.hbm [shape: f32[8,4,32], index: 3, kind: output, shape index: {}]
  %s4 = sld [smem:[#allocation0]]
  $region34: #{tpu_custom_call.1} parent=0
    _
  %s6 = ssub.s32 1, %s4
  %s7 = scalar_select 0, %s6, %s4
  $region1: #{tpu_custom_call.1} parent=0
    #allocation2 [shape = 'u8[16384]{0}', space=vmem, size = 0x4000, scoped, tag = 'input window, operand 0, single buffered']
    #allocation3 [shape = 's32[1]{0}', space=sflag, size = 0x4, scoped, tag = 'scoped memory for tpu_custom_call.1']
    #allocation4 [shape = 's32[1]{0}', space=sflag, size = 0x4, scoped, tag = 'scoped memory for tpu_custom_call.1']
    #allocation5 [shape = 'u8[32768]{0}', space=vmem, size = 0x8000, scoped, tag = 'input window, operand 1, single buffered']
    #allocation6 [shape = 's32[1]{0}', space=sflag, size = 0x4, scoped, tag = 'scoped memory for tpu_custom_call.1']
    #allocation7 [shape = 'u8[2048]{0}', space=vmem, size = 0x800, scoped, tag = 'input window, operand 2, single buffered']
    #allocation8 [shape = 'u8[16384]{0}', space=vmem, size = 0x4000, scoped, tag = 'output window, operand 0, single buffered']
    %8 = vsyncpa [#allocation3], 0
    %9 = vsyncpa [#allocation6], 0
    %10 = vsyncpa [#allocation4], 0
    // Predicated region
    $region2: #{tpu_custom_call.1} parent=1 // pred_check
      _
    $region3: #{tpu_custom_call.1} parent=1 // pred_check_branch
      %12 = sbr.rel (0) target = $region5
    $region4: #{tpu_custom_call.1} parent=1 // pred_region
      %14 = vsyncadd [#allocation3], 0
      %s15 = sshll.u32 %s0, 4
      %s16 = int_to_ptr.hbm [resolvable:$true] %s15
      %s17 = sshll.u32 [#allocation2], 4
      %s18 = int_to_ptr.vmem [resolvable:$true] %s17
      %23 = dma.hbm_to_vmem [thread:$0]  %s16, 512, %s18, [#allocation3], 64, 64, 4
    $region5: #{tpu_custom_call.1} parent=1 // pred_fallthru
      _
    // Predicated region
    $region6: #{tpu_custom_call.1} parent=1 // pred_check
      _
    $region7: #{tpu_custom_call.1} parent=1 // pred_check_branch
      %25 = sbr.rel (0) target = $region9
    $region8: #{tpu_custom_call.1} parent=1 // pred_region
      %27 = vsyncadd [#allocation6], 0
      %s28 = sshll.u32 %s1, 4
      %s29 = int_to_ptr.hbm [resolvable:$true] %s28
      %s30 = sshll.u32 [#allocation5], 4
      %s31 = int_to_ptr.vmem [resolvable:$true] %s30
      %36 = dma.hbm_to_vmem [thread:$0]  %s29, 1024, %s31, [#allocation6], 64, 64, 4
    $region9: #{tpu_custom_call.1} parent=1 // pred_fallthru
      _
    // Predicated region
    $region10: #{tpu_custom_call.1} parent=1 // pred_check
      _
    $region11: #{tpu_custom_call.1} parent=1 // pred_check_branch
      %38 = sbr.rel (0) target = $region13
    $region12: #{tpu_custom_call.1} parent=1 // pred_region
      %40 = vsyncadd [#allocation6], 0
      %s42 = sshll.u32 %s2, 4
      %s43 = int_to_ptr.hbm [resolvable:$true] %s42
      %s44 = sshll.u32 [#allocation7], 4
      %s45 = int_to_ptr.vmem [resolvable:$true] %s44
      %47 = dma.hbm_to_vmem [thread:$0]  %s43, 64, %s45, [#allocation6]
    $region13: #{tpu_custom_call.1} parent=1 // pred_fallthru
      _
    // Predicated region
    $region14: #{tpu_custom_call.1} parent=1 // pred_check
      _
    $region15: #{tpu_custom_call.1} parent=1 // pred_check_branch
      %49 = sbr.rel (0) target = $region17
    $region16: #{tpu_custom_call.1} parent=1 // pred_region
      %51 = dma.done [#allocation3], 512
    $region17: #{tpu_custom_call.1} parent=1 // pred_fallthru
      _
    // Predicated region
    $region18: #{tpu_custom_call.1} parent=1 // pred_check
      _
    $region19: #{tpu_custom_call.1} parent=1 // pred_check_branch
      %53 = sbr.rel (0) target = $region21
    $region20: #{tpu_custom_call.1} parent=1 // pred_region
      %55 = dma.done [#allocation6], 1024
    $region21: #{tpu_custom_call.1} parent=1 // pred_fallthru
      _
    // Predicated region
    $region22: #{tpu_custom_call.1} parent=1 // pred_check
      _
    $region23: #{tpu_custom_call.1} parent=1 // pred_check_branch
      %57 = sbr.rel (0) target = $region25
    $region24: #{tpu_custom_call.1} parent=1 // pred_region
      %59 = dma.done [#allocation6], 64
    $region25: #{tpu_custom_call.1} parent=1 // pred_fallthru
      _
    %v60 = vld [vmem:[#allocation2] sm:$0xf]
    %v61 = vld [vmem:[#allocation2 + $0x4] sm:$0xf]
    %v62 = vld [vmem:[#allocation2 + $0x8] sm:$0xf]
    %v63 = vld [vmem:[#allocation2 + $0xc] sm:$0xf]
    %v64 = vld [vmem:[#allocation2 + $0x10] sm:$0xf]
    %v65 = vld [vmem:[#allocation2 + $0x14] sm:$0xf]
    %v66 = vld [vmem:[#allocation2 + $0x18] sm:$0xf]
    %v67 = vld [vmem:[#allocation2 + $0x1c] sm:$0xf]
    %v68 = vld [vmem:[#allocation5] sm:$0xf]
    %v69 = vld [vmem:[#allocation5 + $0x4] sm:$0xf]
    %v70 = vld [vmem:[#allocation5 + $0x8] sm:$0xf]
    %v71 = vld [vmem:[#allocation5 + $0xc] sm:$0xf]
    %v72 = vld [vmem:[#allocation5 + $0x10] sm:$0xf]
    %v73 = vld [vmem:[#allocation5 + $0x14] sm:$0xf]
    %v74 = vld [vmem:[#allocation5 + $0x18] sm:$0xf]
    %v75 = vld [vmem:[#allocation5 + $0x1c] sm:$0xf]
    %v76 = vld [vmem:[#allocation5 + $0x20] sm:$0xf]
    %v77 = vld [vmem:[#allocation5 + $0x24] sm:$0xf]
    %v78 = vld [vmem:[#allocation5 + $0x28] sm:$0xf]
    %v79 = vld [vmem:[#allocation5 + $0x2c] sm:$0xf]
    %v80 = vld [vmem:[#allocation5 + $0x30] sm:$0xf]
    %v81 = vld [vmem:[#allocation5 + $0x34] sm:$0xf]
    %v82 = vld [vmem:[#allocation5 + $0x38] sm:$0xf]
    %v83 = vld [vmem:[#allocation5 + $0x3c] sm:$0xf]
    %v84 = vld [vmem:[#allocation7] sm:$0xf]
    %86 = vset.pattern.permute.xlu0 0
    %87 = vperm.xlu0 %86, %v60
    %v88 = vpop.permute.xlu0 %87
    %91 = vset.pattern.permute.xlu0 0
    %92 = vperm.xlu0 %91, %v61
    %v93 = vpop.permute.xlu0 %92
    %96 = vset.pattern.permute.xlu0 0
    %97 = vperm.xlu0 %96, %v62
    %v98 = vpop.permute.xlu0 %97
    %101 = vset.pattern.permute.xlu0 0
    %102 = vperm.xlu0 %101, %v63
    %v103 = vpop.permute.xlu0 %102
    %106 = vset.pattern.permute.xlu0 0
    %107 = vperm.xlu0 %106, %v64
    %v108 = vpop.permute.xlu0 %107
    %111 = vset.pattern.permute.xlu0 0
    %112 = vperm.xlu0 %111, %v65
    %v113 = vpop.permute.xlu0 %112
    %116 = vset.pattern.permute.xlu0 0
    %117 = vperm.xlu0 %116, %v66
    %v118 = vpop.permute.xlu0 %117
    %121 = vset.pattern.permute.xlu0 0
    %122 = vperm.xlu0 %121, %v67
    %v123 = vpop.permute.xlu0 %122
    %v125 = vmul.f32 %v88, %v68
    %v126 = vmul.f32 %v93, %v68
    %v127 = vmul.f32 %v98, %v68
    %v128 = vmul.f32 %v103, %v68
    %v129 = vmul.f32 %v108, %v68
    %v130 = vmul.f32 %v113, %v68
    %v131 = vmul.f32 %v118, %v68
    %v132 = vmul.f32 %v123, %v68
    %v133 = vadd.f32 %v125, 0.0
    %v134 = vadd.f32 %v126, 0.0
    %v135 = vadd.f32 %v127, 0.0
    %v136 = vadd.f32 %v128, 0.0
    %v137 = vadd.f32 %v129, 0.0
    %v138 = vadd.f32 %v130, 0.0
    %v139 = vadd.f32 %v131, 0.0
    %v140 = vadd.f32 %v132, 0.0
    %141 = vset.pattern.permute.xlu0 1
    %142 = vperm.xlu0 %141, %v60
    %v143 = vpop.permute.xlu0 %142
    %145 = vset.pattern.permute.xlu0 1
    %146 = vperm.xlu0 %145, %v61
    %v147 = vpop.permute.xlu0 %146
    %149 = vset.pattern.permute.xlu0 1
    %150 = vperm.xlu0 %149, %v62
    %v151 = vpop.permute.xlu0 %150
    %153 = vset.pattern.permute.xlu0 1
    %154 = vperm.xlu0 %153, %v63
    %v155 = vpop.permute.xlu0 %154
    %157 = vset.pattern.permute.xlu0 1
    %158 = vperm.xlu0 %157, %v64
    %v159 = vpop.permute.xlu0 %158
    %161 = vset.pattern.permute.xlu0 1
    %162 = vperm.xlu0 %161, %v65
    %v163 = vpop.permute.xlu0 %162
    %165 = vset.pattern.permute.xlu0 1
    %166 = vperm.xlu0 %165, %v66
    %v167 = vpop.permute.xlu0 %166
    %169 = vset.pattern.permute.xlu0 1
    %170 = vperm.xlu0 %169, %v67
    %v171 = vpop.permute.xlu0 %170
    %v173 = vmul.f32 %v143, %v69
    %v174 = vmul.f32 %v147, %v69
    %v175 = vmul.f32 %v151, %v69
    %v176 = vmul.f32 %v155, %v69
    %v177 = vmul.f32 %v159, %v69
    %v178 = vmul.f32 %v163, %v69
    %v179 = vmul.f32 %v167, %v69
    %v180 = vmul.f32 %v171, %v69
    %v181 = vadd.f32 %v133, %v173
    %v182 = vadd.f32 %v134, %v174
    %v183 = vadd.f32 %v135, %v175
    %v184 = vadd.f32 %v136, %v176
    %v185 = vadd.f32 %v137, %v177
    %v186 = vadd.f32 %v138, %v178
    %v187 = vadd.f32 %v139, %v179
    %v188 = vadd.f32 %v140, %v180
    %189 = vset.pattern.permute.xlu0 2
    %190 = vperm.xlu0 %189, %v60
    %v191 = vpop.permute.xlu0 %190
    %193 = vset.pattern.permute.xlu0 2
    %194 = vperm.xlu0 %193, %v61
    %v195 = vpop.permute.xlu0 %194
    %197 = vset.pattern.permute.xlu0 2
    %198 = vperm.xlu0 %197, %v62
    %v199 = vpop.permute.xlu0 %198
    %201 = vset.pattern.permute.xlu0 2
    %202 = vperm.xlu0 %201, %v63
    %v203 = vpop.permute.xlu0 %202
    %205 = vset.pattern.permute.xlu0 2
    %206 = vperm.xlu0 %205, %v64
    %v207 = vpop.permute.xlu0 %206
    %209 = vset.pattern.permute.xlu0 2
    %210 = vperm.xlu0 %209, %v65
    %v211 = vpop.permute.xlu0 %210
    %213 = vset.pattern.permute.xlu0 2
    %214 = vperm.xlu0 %213, %v66
    %v215 = vpop.permute.xlu0 %214
    %217 = vset.pattern.permute.xlu0 2
    %218 = vperm.xlu0 %217, %v67
    %v219 = vpop.permute.xlu0 %218
    %v221 = vmul.f32 %v191, %v70
    %v222 = vmul.f32 %v195, %v70
    %v223 = vmul.f32 %v199, %v70
    %v224 = vmul.f32 %v203, %v70
    %v225 = vmul.f32 %v207, %v70
    %v226 = vmul.f32 %v211, %v70
    %v227 = vmul.f32 %v215, %v70
    %v228 = vmul.f32 %v219, %v70
    %v229 = vadd.f32 %v181, %v221
    %v230 = vadd.f32 %v182, %v222
    %v231 = vadd.f32 %v183, %v223
    %v232 = vadd.f32 %v184, %v224
    %v233 = vadd.f32 %v185, %v225
    %v234 = vadd.f32 %v186, %v226
    %v235 = vadd.f32 %v187, %v227
    %v236 = vadd.f32 %v188, %v228
    %237 = vset.pattern.permute.xlu0 3
    %238 = vperm.xlu0 %237, %v60
    %v239 = vpop.permute.xlu0 %238
    %241 = vset.pattern.permute.xlu0 3
    %242 = vperm.xlu0 %241, %v61
    %v243 = vpop.permute.xlu0 %242
    %245 = vset.pattern.permute.xlu0 3
    %246 = vperm.xlu0 %245, %v62
    %v247 = vpop.permute.xlu0 %246
    %249 = vset.pattern.permute.xlu0 3
    %250 = vperm.xlu0 %249, %v63
    %v251 = vpop.permute.xlu0 %250
    %253 = vset.pattern.permute.xlu0 3
    %254 = vperm.xlu0 %253, %v64
    %v255 = vpop.permute.xlu0 %254
    %257 = vset.pattern.permute.xlu0 3
    %258 = vperm.xlu0 %257, %v65
    %v259 = vpop.permute.xlu0 %258
    %261 = vset.pattern.permute.xlu0 3
    %262 = vperm.xlu0 %261, %v66
    %v263 = vpop.permute.xlu0 %262
    %265 = vset.pattern.permute.xlu0 3
    %266 = vperm.xlu0 %265, %v67
    %v267 = vpop.permute.xlu0 %266
    %v269 = vmul.f32 %v239, %v71
    %v270 = vmul.f32 %v243, %v71
    %v271 = vmul.f32 %v247, %v71
    %v272 = vmul.f32 %v251, %v71
    %v273 = vmul.f32 %v255, %v71
    %v274 = vmul.f32 %v259, %v71
    %v275 = vmul.f32 %v263, %v71
    %v276 = vmul.f32 %v267, %v71
    %v277 = vadd.f32 %v229, %v269
    %v278 = vadd.f32 %v230, %v270
    %v279 = vadd.f32 %v231, %v271
    %v280 = vadd.f32 %v232, %v272
    %v281 = vadd.f32 %v233, %v273
    %v282 = vadd.f32 %v234, %v274
    %v283 = vadd.f32 %v235, %v275
    %v284 = vadd.f32 %v236, %v276
    %285 = vset.pattern.permute.xlu0 4
    %286 = vperm.xlu0 %285, %v60
    %v287 = vpop.permute.xlu0 %286
    %289 = vset.pattern.permute.xlu0 4
    %290 = vperm.xlu0 %289, %v61
    %v291 = vpop.permute.xlu0 %290
    %293 = vset.pattern.permute.xlu0 4
    %294 = vperm.xlu0 %293, %v62
    %v295 = vpop.permute.xlu0 %294
    %297 = vset.pattern.permute.xlu0 4
    %298 = vperm.xlu0 %297, %v63
    %v299 = vpop.permute.xlu0 %298
    %301 = vset.pattern.permute.xlu0 4
    %302 = vperm.xlu0 %301, %v64
    %v303 = vpop.permute.xlu0 %302
    %305 = vset.pattern.permute.xlu0 4
    %306 = vperm.xlu0 %305, %v65
    %v307 = vpop.permute.xlu0 %306
    %309 = vset.pattern.permute.xlu0 4
    %310 = vperm.xlu0 %309, %v66
    %v311 = vpop.permute.xlu0 %310
    %313 = vset.pattern.permute.xlu0 4
    %314 = vperm.xlu0 %313, %v67
    %v315 = vpop.permute.xlu0 %314
    %v317 = vmul.f32 %v287, %v72
    %v318 = vmul.f32 %v291, %v72
    %v319 = vmul.f32 %v295, %v72
    %v320 = vmul.f32 %v299, %v72
    %v321 = vmul.f32 %v303, %v72
    %v322 = vmul.f32 %v307, %v72
    %v323 = vmul.f32 %v311, %v72
    %v324 = vmul.f32 %v315, %v72
    %v325 = vadd.f32 %v277, %v317
    %v326 = vadd.f32 %v278, %v318
    %v327 = vadd.f32 %v279, %v319
    %v328 = vadd.f32 %v280, %v320
    %v329 = vadd.f32 %v281, %v321
    %v330 = vadd.f32 %v282, %v322
    %v331 = vadd.f32 %v283, %v323
    %v332 = vadd.f32 %v284, %v324
    %333 = vset.pattern.permute.xlu0 5
    %334 = vperm.xlu0 %333, %v60
    %v335 = vpop.permute.xlu0 %334
    %337 = vset.pattern.permute.xlu0 5
    %338 = vperm.xlu0 %337, %v61
    %v339 = vpop.permute.xlu0 %338
    %341 = vset.pattern.permute.xlu0 5
    %342 = vperm.xlu0 %341, %v62
    %v343 = vpop.permute.xlu0 %342
    %345 = vset.pattern.permute.xlu0 5
    %346 = vperm.xlu0 %345, %v63
    %v347 = vpop.permute.xlu0 %346
    %349 = vset.pattern.permute.xlu0 5
    %350 = vperm.xlu0 %349, %v64
    %v351 = vpop.permute.xlu0 %350
    %353 = vset.pattern.permute.xlu0 5
    %354 = vperm.xlu0 %353, %v65
    %v355 = vpop.permute.xlu0 %354
    %357 = vset.pattern.permute.xlu0 5
    %358 = vperm.xlu0 %357, %v66
    %v359 = vpop.permute.xlu0 %358
    %361 = vset.pattern.permute.xlu0 5
    %362 = vperm.xlu0 %361, %v67
    %v363 = vpop.permute.xlu0 %362
    %v365 = vmul.f32 %v335, %v73
    %v366 = vmul.f32 %v339, %v73
    %v367 = vmul.f32 %v343, %v73
    %v368 = vmul.f32 %v347, %v73
    %v369 = vmul.f32 %v351, %v73
    %v370 = vmul.f32 %v355, %v73
    %v371 = vmul.f32 %v359, %v73
    %v372 = vmul.f32 %v363, %v73
    %v373 = vadd.f32 %v325, %v365
    %v374 = vadd.f32 %v326, %v366
    %v375 = vadd.f32 %v327, %v367
    %v376 = vadd.f32 %v328, %v368
    %v377 = vadd.f32 %v329, %v369
    %v378 = vadd.f32 %v330, %v370
    %v379 = vadd.f32 %v331, %v371
    %v380 = vadd.f32 %v332, %v372
    %381 = vset.pattern.permute.xlu0 6
    %382 = vperm.xlu0 %381, %v60
    %v383 = vpop.permute.xlu0 %382
    %385 = vset.pattern.permute.xlu0 6
    %386 = vperm.xlu0 %385, %v61
    %v387 = vpop.permute.xlu0 %386
    %389 = vset.pattern.permute.xlu0 6
    %390 = vperm.xlu0 %389, %v62
    %v391 = vpop.permute.xlu0 %390
    %393 = vset.pattern.permute.xlu0 6
    %394 = vperm.xlu0 %393, %v63
    %v395 = vpop.permute.xlu0 %394
    %397 = vset.pattern.permute.xlu0 6
    %398 = vperm.xlu0 %397, %v64
    %v399 = vpop.permute.xlu0 %398
    %401 = vset.pattern.permute.xlu0 6
    %402 = vperm.xlu0 %401, %v65
    %v403 = vpop.permute.xlu0 %402
    %405 = vset.pattern.permute.xlu0 6
    %406 = vperm.xlu0 %405, %v66
    %v407 = vpop.permute.xlu0 %406
    %409 = vset.pattern.permute.xlu0 6
    %410 = vperm.xlu0 %409, %v67
    %v411 = vpop.permute.xlu0 %410
    %v413 = vmul.f32 %v383, %v74
    %v414 = vmul.f32 %v387, %v74
    %v415 = vmul.f32 %v391, %v74
    %v416 = vmul.f32 %v395, %v74
    %v417 = vmul.f32 %v399, %v74
    %v418 = vmul.f32 %v403, %v74
    %v419 = vmul.f32 %v407, %v74
    %v420 = vmul.f32 %v411, %v74
    %v421 = vadd.f32 %v373, %v413
    %v422 = vadd.f32 %v374, %v414
    %v423 = vadd.f32 %v375, %v415
    %v424 = vadd.f32 %v376, %v416
    %v425 = vadd.f32 %v377, %v417
    %v426 = vadd.f32 %v378, %v418
    %v427 = vadd.f32 %v379, %v419
    %v428 = vadd.f32 %v380, %v420
    %429 = vset.pattern.permute.xlu0 7
    %430 = vperm.xlu0 %429, %v60
    %v431 = vpop.permute.xlu0 %430
    %433 = vset.pattern.permute.xlu0 7
    %434 = vperm.xlu0 %433, %v61
    %v435 = vpop.permute.xlu0 %434
    %437 = vset.pattern.permute.xlu0 7
    %438 = vperm.xlu0 %437, %v62
    %v439 = vpop.permute.xlu0 %438
    %441 = vset.pattern.permute.xlu0 7
    %442 = vperm.xlu0 %441, %v63
    %v443 = vpop.permute.xlu0 %442
    %445 = vset.pattern.permute.xlu0 7
    %446 = vperm.xlu0 %445, %v64
    %v447 = vpop.permute.xlu0 %446
    %449 = vset.pattern.permute.xlu0 7
    %450 = vperm.xlu0 %449, %v65
    %v451 = vpop.permute.xlu0 %450
    %453 = vset.pattern.permute.xlu0 7
    %454 = vperm.xlu0 %453, %v66
    %v455 = vpop.permute.xlu0 %454
    %457 = vset.pattern.permute.xlu0 7
    %458 = vperm.xlu0 %457, %v67
    %v459 = vpop.permute.xlu0 %458
    %v461 = vmul.f32 %v431, %v75
    %v462 = vmul.f32 %v435, %v75
    %v463 = vmul.f32 %v439, %v75
    %v464 = vmul.f32 %v443, %v75
    %v465 = vmul.f32 %v447, %v75
    %v466 = vmul.f32 %v451, %v75
    %v467 = vmul.f32 %v455, %v75
    %v468 = vmul.f32 %v459, %v75
    %v469 = vadd.f32 %v421, %v461
    %v470 = vadd.f32 %v422, %v462
    %v471 = vadd.f32 %v423, %v463
    %v472 = vadd.f32 %v424, %v464
    %v473 = vadd.f32 %v425, %v465
    %v474 = vadd.f32 %v426, %v466
    %v475 = vadd.f32 %v427, %v467
    %v476 = vadd.f32 %v428, %v468
    %477 = vset.pattern.permute.xlu0 8
    %478 = vperm.xlu0 %477, %v60
    %v479 = vpop.permute.xlu0 %478
    %481 = vset.pattern.permute.xlu0 8
    %482 = vperm.xlu0 %481, %v61
    %v483 = vpop.permute.xlu0 %482
    %485 = vset.pattern.permute.xlu0 8
    %486 = vperm.xlu0 %485, %v62
    %v487 = vpop.permute.xlu0 %486
    %489 = vset.pattern.permute.xlu0 8
    %490 = vperm.xlu0 %489, %v63
    %v491 = vpop.permute.xlu0 %490
    %493 = vset.pattern.permute.xlu0 8
    %494 = vperm.xlu0 %493, %v64
    %v495 = vpop.permute.xlu0 %494
    %497 = vset.pattern.permute.xlu0 8
    %498 = vperm.xlu0 %497, %v65
    %v499 = vpop.permute.xlu0 %498
    %501 = vset.pattern.permute.xlu0 8
    %502 = vperm.xlu0 %501, %v66
    %v503 = vpop.permute.xlu0 %502
    %505 = vset.pattern.permute.xlu0 8
    %506 = vperm.xlu0 %505, %v67
    %v507 = vpop.permute.xlu0 %506
    %v509 = vmul.f32 %v479, %v76
    %v510 = vmul.f32 %v483, %v76
    %v511 = vmul.f32 %v487, %v76
    %v512 = vmul.f32 %v491, %v76
    %v513 = vmul.f32 %v495, %v76
    %v514 = vmul.f32 %v499, %v76
    %v515 = vmul.f32 %v503, %v76
    %v516 = vmul.f32 %v507, %v76
    %v517 = vadd.f32 %v469, %v509
    %v518 = vadd.f32 %v470, %v510
    %v519 = vadd.f32 %v471, %v511
    %v520 = vadd.f32 %v472, %v512
    %v521 = vadd.f32 %v473, %v513
    %v522 = vadd.f32 %v474, %v514
    %v523 = vadd.f32 %v475, %v515
    %v524 = vadd.f32 %v476, %v516
    %525 = vset.pattern.permute.xlu0 9
    %526 = vperm.xlu0 %525, %v60
    %v527 = vpop.permute.xlu0 %526
    %529 = vset.pattern.permute.xlu0 9
    %530 = vperm.xlu0 %529, %v61
    %v531 = vpop.permute.xlu0 %530
    %533 = vset.pattern.permute.xlu0 9
    %534 = vperm.xlu0 %533, %v62
    %v535 = vpop.permute.xlu0 %534
    %537 = vset.pattern.permute.xlu0 9
    %538 = vperm.xlu0 %537, %v63
    %v539 = vpop.permute.xlu0 %538
    %541 = vset.pattern.permute.xlu0 9
    %542 = vperm.xlu0 %541, %v64
    %v543 = vpop.permute.xlu0 %542
    %545 = vset.pattern.permute.xlu0 9
    %546 = vperm.xlu0 %545, %v65
    %v547 = vpop.permute.xlu0 %546
    %549 = vset.pattern.permute.xlu0 9
    %550 = vperm.xlu0 %549, %v66
    %v551 = vpop.permute.xlu0 %550
    %553 = vset.pattern.permute.xlu0 9
    %554 = vperm.xlu0 %553, %v67
    %v555 = vpop.permute.xlu0 %554
    %v557 = vmul.f32 %v527, %v77
    %v558 = vmul.f32 %v531, %v77
    %v559 = vmul.f32 %v535, %v77
    %v560 = vmul.f32 %v539, %v77
    %v561 = vmul.f32 %v543, %v77
    %v562 = vmul.f32 %v547, %v77
    %v563 = vmul.f32 %v551, %v77
    %v564 = vmul.f32 %v555, %v77
    %v565 = vadd.f32 %v517, %v557
    %v566 = vadd.f32 %v518, %v558
    %v567 = vadd.f32 %v519, %v559
    %v568 = vadd.f32 %v520, %v560
    %v569 = vadd.f32 %v521, %v561
    %v570 = vadd.f32 %v522, %v562
    %v571 = vadd.f32 %v523, %v563
    %v572 = vadd.f32 %v524, %v564
    %573 = vset.pattern.permute.xlu0 10
    %574 = vperm.xlu0 %573, %v60
    %v575 = vpop.permute.xlu0 %574
    %577 = vset.pattern.permute.xlu0 10
    %578 = vperm.xlu0 %577, %v61
    %v579 = vpop.permute.xlu0 %578
    %581 = vset.pattern.permute.xlu0 10
    %582 = vperm.xlu0 %581, %v62
    %v583 = vpop.permute.xlu0 %582
    %585 = vset.pattern.permute.xlu0 10
    %586 = vperm.xlu0 %585, %v63
    %v587 = vpop.permute.xlu0 %586
    %589 = vset.pattern.permute.xlu0 10
    %590 = vperm.xlu0 %589, %v64
    %v591 = vpop.permute.xlu0 %590
    %593 = vset.pattern.permute.xlu0 10
    %594 = vperm.xlu0 %593, %v65
    %v595 = vpop.permute.xlu0 %594
    %597 = vset.pattern.permute.xlu0 10
    %598 = vperm.xlu0 %597, %v66
    %v599 = vpop.permute.xlu0 %598
    %601 = vset.pattern.permute.xlu0 10
    %602 = vperm.xlu0 %601, %v67
    %v603 = vpop.permute.xlu0 %602
    %v605 = vmul.f32 %v575, %v78
    %v606 = vmul.f32 %v579, %v78
    %v607 = vmul.f32 %v583, %v78
    %v608 = vmul.f32 %v587, %v78
    %v609 = vmul.f32 %v591, %v78
    %v610 = vmul.f32 %v595, %v78
    %v611 = vmul.f32 %v599, %v78
    %v612 = vmul.f32 %v603, %v78
    %v613 = vadd.f32 %v565, %v605
    %v614 = vadd.f32 %v566, %v606
    %v615 = vadd.f32 %v567, %v607
    %v616 = vadd.f32 %v568, %v608
    %v617 = vadd.f32 %v569, %v609
    %v618 = vadd.f32 %v570, %v610
    %v619 = vadd.f32 %v571, %v611
    %v620 = vadd.f32 %v572, %v612
    %621 = vset.pattern.permute.xlu0 11
    %622 = vperm.xlu0 %621, %v60
    %v623 = vpop.permute.xlu0 %622
    %625 = vset.pattern.permute.xlu0 11
    %626 = vperm.xlu0 %625, %v61
    %v627 = vpop.permute.xlu0 %626
    %629 = vset.pattern.permute.xlu0 11
    %630 = vperm.xlu0 %629, %v62
    %v631 = vpop.permute.xlu0 %630
    %633 = vset.pattern.permute.xlu0 11
    %634 = vperm.xlu0 %633, %v63
    %v635 = vpop.permute.xlu0 %634
    %637 = vset.pattern.permute.xlu0 11
    %638 = vperm.xlu0 %637, %v64
    %v639 = vpop.permute.xlu0 %638
    %641 = vset.pattern.permute.xlu0 11
    %642 = vperm.xlu0 %641, %v65
    %v643 = vpop.permute.xlu0 %642
    %645 = vset.pattern.permute.xlu0 11
    %646 = vperm.xlu0 %645, %v66
    %v647 = vpop.permute.xlu0 %646
    %649 = vset.pattern.permute.xlu0 11
    %650 = vperm.xlu0 %649, %v67
    %v651 = vpop.permute.xlu0 %650
    %v653 = vmul.f32 %v623, %v79
    %v654 = vmul.f32 %v627, %v79
    %v655 = vmul.f32 %v631, %v79
    %v656 = vmul.f32 %v635, %v79
    %v657 = vmul.f32 %v639, %v79
    %v658 = vmul.f32 %v643, %v79
    %v659 = vmul.f32 %v647, %v79
    %v660 = vmul.f32 %v651, %v79
    %v661 = vadd.f32 %v613, %v653
    %v662 = vadd.f32 %v614, %v654
    %v663 = vadd.f32 %v615, %v655
    %v664 = vadd.f32 %v616, %v656
    %v665 = vadd.f32 %v617, %v657
    %v666 = vadd.f32 %v618, %v658
    %v667 = vadd.f32 %v619, %v659
    %v668 = vadd.f32 %v620, %v660
    %669 = vset.pattern.permute.xlu0 12
    %670 = vperm.xlu0 %669, %v60
    %v671 = vpop.permute.xlu0 %670
    %673 = vset.pattern.permute.xlu0 12
    %674 = vperm.xlu0 %673, %v61
    %v675 = vpop.permute.xlu0 %674
    %677 = vset.pattern.permute.xlu0 12
    %678 = vperm.xlu0 %677, %v62
    %v679 = vpop.permute.xlu0 %678
    %681 = vset.pattern.permute.xlu0 12
    %682 = vperm.xlu0 %681, %v63
    %v683 = vpop.permute.xlu0 %682
    %685 = vset.pattern.permute.xlu0 12
    %686 = vperm.xlu0 %685, %v64
    %v687 = vpop.permute.xlu0 %686
    %689 = vset.pattern.permute.xlu0 12
    %690 = vperm.xlu0 %689, %v65
    %v691 = vpop.permute.xlu0 %690
    %693 = vset.pattern.permute.xlu0 12
    %694 = vperm.xlu0 %693, %v66
    %v695 = vpop.permute.xlu0 %694
    %697 = vset.pattern.permute.xlu0 12
    %698 = vperm.xlu0 %697, %v67
    %v699 = vpop.permute.xlu0 %698
    %v701 = vmul.f32 %v671, %v80
    %v702 = vmul.f32 %v675, %v80
    %v703 = vmul.f32 %v679, %v80
    %v704 = vmul.f32 %v683, %v80
    %v705 = vmul.f32 %v687, %v80
    %v706 = vmul.f32 %v691, %v80
    %v707 = vmul.f32 %v695, %v80
    %v708 = vmul.f32 %v699, %v80
    %v709 = vadd.f32 %v661, %v701
    %v710 = vadd.f32 %v662, %v702
    %v711 = vadd.f32 %v663, %v703
    %v712 = vadd.f32 %v664, %v704
    %v713 = vadd.f32 %v665, %v705
    %v714 = vadd.f32 %v666, %v706
    %v715 = vadd.f32 %v667, %v707
    %v716 = vadd.f32 %v668, %v708
    %717 = vset.pattern.permute.xlu0 13
    %718 = vperm.xlu0 %717, %v60
    %v719 = vpop.permute.xlu0 %718
    %721 = vset.pattern.permute.xlu0 13
    %722 = vperm.xlu0 %721, %v61
    %v723 = vpop.permute.xlu0 %722
    %725 = vset.pattern.permute.xlu0 13
    %726 = vperm.xlu0 %725, %v62
    %v727 = vpop.permute.xlu0 %726
    %729 = vset.pattern.permute.xlu0 13
    %730 = vperm.xlu0 %729, %v63
    %v731 = vpop.permute.xlu0 %730
    %733 = vset.pattern.permute.xlu0 13
    %734 = vperm.xlu0 %733, %v64
    %v735 = vpop.permute.xlu0 %734
    %737 = vset.pattern.permute.xlu0 13
    %738 = vperm.xlu0 %737, %v65
    %v739 = vpop.permute.xlu0 %738
    %741 = vset.pattern.permute.xlu0 13
    %742 = vperm.xlu0 %741, %v66
    %v743 = vpop.permute.xlu0 %742
    %745 = vset.pattern.permute.xlu0 13
    %746 = vperm.xlu0 %745, %v67
    %v747 = vpop.permute.xlu0 %746
    %v749 = vmul.f32 %v719, %v81
    %v750 = vmul.f32 %v723, %v81
    %v751 = vmul.f32 %v727, %v81
    %v752 = vmul.f32 %v731, %v81
    %v753 = vmul.f32 %v735, %v81
    %v754 = vmul.f32 %v739, %v81
    %v755 = vmul.f32 %v743, %v81
    %v756 = vmul.f32 %v747, %v81
    %v757 = vadd.f32 %v709, %v749
    %v758 = vadd.f32 %v710, %v750
    %v759 = vadd.f32 %v711, %v751
    %v760 = vadd.f32 %v712, %v752
    %v761 = vadd.f32 %v713, %v753
    %v762 = vadd.f32 %v714, %v754
    %v763 = vadd.f32 %v715, %v755
    %v764 = vadd.f32 %v716, %v756
    %765 = vset.pattern.permute.xlu0 14
    %766 = vperm.xlu0 %765, %v60
    %v767 = vpop.permute.xlu0 %766
    %769 = vset.pattern.permute.xlu0 14
    %770 = vperm.xlu0 %769, %v61
    %v771 = vpop.permute.xlu0 %770
    %773 = vset.pattern.permute.xlu0 14
    %774 = vperm.xlu0 %773, %v62
    %v775 = vpop.permute.xlu0 %774
    %777 = vset.pattern.permute.xlu0 14
    %778 = vperm.xlu0 %777, %v63
    %v779 = vpop.permute.xlu0 %778
    %781 = vset.pattern.permute.xlu0 14
    %782 = vperm.xlu0 %781, %v64
    %v783 = vpop.permute.xlu0 %782
    %785 = vset.pattern.permute.xlu0 14
    %786 = vperm.xlu0 %785, %v65
    %v787 = vpop.permute.xlu0 %786
    %789 = vset.pattern.permute.xlu0 14
    %790 = vperm.xlu0 %789, %v66
    %v791 = vpop.permute.xlu0 %790
    %793 = vset.pattern.permute.xlu0 14
    %794 = vperm.xlu0 %793, %v67
    %v795 = vpop.permute.xlu0 %794
    %v797 = vmul.f32 %v767, %v82
    %v798 = vmul.f32 %v771, %v82
    %v799 = vmul.f32 %v775, %v82
    %v800 = vmul.f32 %v779, %v82
    %v801 = vmul.f32 %v783, %v82
    %v802 = vmul.f32 %v787, %v82
    %v803 = vmul.f32 %v791, %v82
    %v804 = vmul.f32 %v795, %v82
    %v805 = vadd.f32 %v757, %v797
    %v806 = vadd.f32 %v758, %v798
    %v807 = vadd.f32 %v759, %v799
    %v808 = vadd.f32 %v760, %v800
    %v809 = vadd.f32 %v761, %v801
    %v810 = vadd.f32 %v762, %v802
    %v811 = vadd.f32 %v763, %v803
    %v812 = vadd.f32 %v764, %v804
    %813 = vset.pattern.permute.xlu0 15
    %814 = vperm.xlu0 %813, %v60
    %v815 = vpop.permute.xlu0 %814
    %817 = vset.pattern.permute.xlu0 15
    %818 = vperm.xlu0 %817, %v61
    %v819 = vpop.permute.xlu0 %818
    %821 = vset.pattern.permute.xlu0 15
    %822 = vperm.xlu0 %821, %v62
    %v823 = vpop.permute.xlu0 %822
    %825 = vset.pattern.permute.xlu0 15
    %826 = vperm.xlu0 %825, %v63
    %v827 = vpop.permute.xlu0 %826
    %829 = vset.pattern.permute.xlu0 15
    %830 = vperm.xlu0 %829, %v64
    %v831 = vpop.permute.xlu0 %830
    %833 = vset.pattern.permute.xlu0 15
    %834 = vperm.xlu0 %833, %v65
    %v835 = vpop.permute.xlu0 %834
    %837 = vset.pattern.permute.xlu0 15
    %838 = vperm.xlu0 %837, %v66
    %v839 = vpop.permute.xlu0 %838
    %841 = vset.pattern.permute.xlu0 15
    %842 = vperm.xlu0 %841, %v67
    %v843 = vpop.permute.xlu0 %842
    %v845 = vmul.f32 %v815, %v83
    %v846 = vmul.f32 %v819, %v83
    %v847 = vmul.f32 %v823, %v83
    %v848 = vmul.f32 %v827, %v83
    %v849 = vmul.f32 %v831, %v83
    %v850 = vmul.f32 %v835, %v83
    %v851 = vmul.f32 %v839, %v83
    %v852 = vmul.f32 %v843, %v83
    %v853 = vadd.f32 %v805, %v845
    %v854 = vadd.f32 %v806, %v846
    %v855 = vadd.f32 %v807, %v847
    %v856 = vadd.f32 %v808, %v848
    %v857 = vadd.f32 %v809, %v849
    %v858 = vadd.f32 %v810, %v850
    %v859 = vadd.f32 %v811, %v851
    %v860 = vadd.f32 %v812, %v852
    %v861 = vadd.f32 %v853, %v84
    %v862 = vadd.f32 %v854, %v84
    %v863 = vadd.f32 %v855, %v84
    %v864 = vadd.f32 %v856, %v84
    %v865 = vadd.f32 %v857, %v84
    %v866 = vadd.f32 %v858, %v84
    %v867 = vadd.f32 %v859, %v84
    %v868 = vadd.f32 %v860, %v84
    %vm869 = vcmask 257024
    %870 = vst.msk [vmem:[#allocation8] sm:$0xf] %vm869, %v861
    %871 = vst.msk [vmem:[#allocation8 + $0x4] sm:$0xf] %vm869, %v862
    %872 = vst.msk [vmem:[#allocation8 + $0x8] sm:$0xf] %vm869, %v863
    %873 = vst.msk [vmem:[#allocation8 + $0xc] sm:$0xf] %vm869, %v864
    %874 = vst.msk [vmem:[#allocation8 + $0x10] sm:$0xf] %vm869, %v865
    %875 = vst.msk [vmem:[#allocation8 + $0x14] sm:$0xf] %vm869, %v866
    %876 = vst.msk [vmem:[#allocation8 + $0x18] sm:$0xf] %vm869, %v867
    %877 = vst.msk [vmem:[#allocation8 + $0x1c] sm:$0xf] %vm869, %v868
    // Predicated region
    $region26: #{tpu_custom_call.1} parent=1 // pred_check
      _
    $region27: #{tpu_custom_call.1} parent=1 // pred_check_branch
      %879 = sbr.rel (0) target = $region29
    $region28: #{tpu_custom_call.1} parent=1 // pred_region
      %881 = vsyncadd [#allocation4], 0
      %s882 = sshll.u32 [#allocation8], 4
      %s883 = int_to_ptr.vmem [resolvable:$true] %s882
      %s884 = sshll.u32 %s3, 4
      %s885 = int_to_ptr.hbm [resolvable:$true] %s884
      %890 = dma.vmem_to_hbm [thread:$0]  %s883, 512, %s885, [#allocation4], 64, 64, 4
    $region29: #{tpu_custom_call.1} parent=1 // pred_fallthru
      _
    // Predicated region
    $region30: #{tpu_custom_call.1} parent=1 // pred_check
      _
    $region31: #{tpu_custom_call.1} parent=1 // pred_check_branch
      %892 = sbr.rel (0) target = $region33
    $region32: #{tpu_custom_call.1} parent=1 // pred_region
      %894 = dma.done [#allocation4], 512
    $region33: #{tpu_custom_call.1} parent=1 // pred_fallthru
      _
    %895 = vsyncpa [#allocation3], 1
    %896 = vsyncpa [#allocation6], 1
    %897 = vsyncpa [#allocation4], 1

</llo_original>
